<compile_context>
chip_gen: v7x
topology: tpu7x:2x2x1
jax: 0.10.0
libtpu: 0.0.40
codegen_flags: <defaults>
</compile_context>

<pallas_src>
import jax
import jax.numpy as jnp
from jax.experimental import pallas as pl
from jax.experimental.pallas import tpu as pltpu

_LANES = 128  # lane-dense output / embedding padding width


def _round_up(x, m):
    return (x + m - 1) // m * m


# --------------------------------------------------------------------------
# Fast path: embedding tables resident in VMEM, in-kernel row gather.
# --------------------------------------------------------------------------
def _cbow_vmem_kernel(ctx_idx_ref, out_idx_ref, in_emb_ref, out_emb_ref,
                      loss_ref):
    _, B_T, C = ctx_idx_ref.shape
    K1 = out_idx_ref.shape[2]

    in_tab = in_emb_ref[...]            # (V, D_pad) f32, VMEM-resident
    out_tab = out_emb_ref[...]          # (V, D_pad) f32, VMEM-resident
    ctx_idx = ctx_idx_ref[0]            # (B_T, C)   int32
    out_idx = out_idx_ref[0]            # (B_T, K+1) int32 (col 0 = target)

    # Context mean: C small static gathers accumulated (no big reshapes).
    ctx_sum = jnp.take(in_tab, ctx_idx[:, 0], axis=0)
    for c in range(1, C):
        ctx_sum = ctx_sum + jnp.take(in_tab, ctx_idx[:, c], axis=0)
    ctx_mean = ctx_sum * (1.0 / C)                          # (B_T, D_pad)

    # Fused positive/negative scoring: slot 0 is the target (+), rest (-).
    loss = jnp.zeros((B_T, 1), jnp.float32)
    for k in range(K1):
        rows = jnp.take(out_tab, out_idx[:, k], axis=0)     # (B_T, D_pad)
        score = jnp.sum(rows * ctx_mean, axis=1, keepdims=True)
        score = score if k == 0 else -score
        loss = loss - jnp.log(jax.nn.sigmoid(score) + 1e-10)

    loss_ref[...] = jnp.broadcast_to(loss, loss_ref.shape)  # lane-dense store


def _cbow_vmem_call(ctx_idx3, out_idx3, in_emb_p, out_emb_p, num_tiles, B_T):
    V, D_pad = in_emb_p.shape
    C = ctx_idx3.shape[2]
    K1 = out_idx3.shape[2]
    return pl.pallas_call(
        _cbow_vmem_kernel,
        out_shape=jax.ShapeDtypeStruct((num_tiles * B_T, _LANES), jnp.float32),
        grid=(num_tiles,),
        in_specs=[
            pl.BlockSpec((1, B_T, C), lambda t: (t, 0, 0)),
            pl.BlockSpec((1, B_T, K1), lambda t: (t, 0, 0)),
            # Whole tables, constant block index -> loaded once, stay resident.
            pl.BlockSpec((V, D_pad), lambda t: (0, 0)),
            pl.BlockSpec((V, D_pad), lambda t: (0, 0)),
        ],
        out_specs=pl.BlockSpec((B_T, _LANES), lambda t: (t, 0)),
        compiler_params=pltpu.CompilerParams(
            dimension_semantics=("parallel",)),
    )(ctx_idx3, out_idx3, in_emb_p, out_emb_p)


# --------------------------------------------------------------------------
# Fallback path (large vocab): tables stay in HBM, manual row-gather DMAs
# with one semaphore per buffer and a single bulk wait per buffer.
# --------------------------------------------------------------------------
def _cbow_dma_kernel(ctx_idx_ref, out_idx_ref,        # SMEM scalar prefetch
                     in_emb_hbm, out_emb_hbm,         # (V, D_pad) f32 in HBM
                     loss_ref,                        # (B_T, 128) f32 out
                     ctx_buf, out_buf,                # 3-D VMEM gather scratch
                     ctx_sem, out_sem):               # one DMA sem per buffer
    B_T, C, _ = ctx_buf.shape
    K1 = out_buf.shape[1]
    base = pl.program_id(0) * B_T

    # Issue every row gather; all copies of a buffer share one semaphore.
    @pl.loop(0, B_T)
    def _issue(b):
        for c in range(C):
            row = ctx_idx_ref[(base + b) * C + c]
            pltpu.make_async_copy(in_emb_hbm.at[pl.ds(row, 1)],
                                  ctx_buf.at[b, pl.ds(c, 1)],
                                  ctx_sem.at[0]).start()
        for k in range(K1):
            row = out_idx_ref[(base + b) * K1 + k]
            pltpu.make_async_copy(out_emb_hbm.at[pl.ds(row, 1)],
                                  out_buf.at[b, pl.ds(k, 1)],
                                  out_sem.at[0]).start()

    # Bulk wait: one wait per buffer, sized to the whole buffer (= the sum of
    # all row copies), instead of B_T*(C+K+1) serialized waits.
    pltpu.make_async_copy(ctx_buf, ctx_buf, ctx_sem.at[0]).wait()
    pltpu.make_async_copy(out_buf, out_buf, out_sem.at[0]).wait()

    # Compute directly on the 3-D layout (no reshapes).
    ctx_mean = jnp.mean(ctx_buf[...], axis=1)                         # (B_T, D)
    scores = jnp.sum(out_buf[...] * ctx_mean[:, None, :], axis=2)     # (B_T, K+1)
    col = jax.lax.broadcasted_iota(jnp.int32, scores.shape, 1)
    signed = jnp.where(col == 0, scores, -scores)                     # +target, -negs
    loss = -jnp.sum(jnp.log(jax.nn.sigmoid(signed) + 1e-10),
                    axis=1, keepdims=True)                            # (B_T, 1)
    loss_ref[...] = jnp.broadcast_to(loss, loss_ref.shape)


def _cbow_dma_call(ctx_flat, out_flat, in_emb_p, out_emb_p,
                   num_tiles, B_T, C, K1):
    D_pad = in_emb_p.shape[1]
    grid_spec = pltpu.PrefetchScalarGridSpec(
        num_scalar_prefetch=2,                    # flat ctx / out indices -> SMEM
        grid=(num_tiles,),
        in_specs=[
            pl.BlockSpec(memory_space=pl.ANY),    # in_emb stays in HBM
            pl.BlockSpec(memory_space=pl.ANY),    # out_emb stays in HBM
        ],
        out_specs=pl.BlockSpec((B_T, _LANES), lambda t, *_: (t, 0)),
        scratch_shapes=[
            pltpu.VMEM((B_T, C, D_pad), jnp.float32),    # context rows
            pltpu.VMEM((B_T, K1, D_pad), jnp.float32),   # target + negative rows
            pltpu.SemaphoreType.DMA((1,)),
            pltpu.SemaphoreType.DMA((1,)),
        ],
    )
    return pl.pallas_call(
        _cbow_dma_kernel,
        out_shape=jax.ShapeDtypeStruct((num_tiles * B_T, _LANES), jnp.float32),
        grid_spec=grid_spec,
        compiler_params=pltpu.CompilerParams(
            dimension_semantics=("parallel",)),
    )(ctx_flat, out_flat, in_emb_p, out_emb_p)


# --------------------------------------------------------------------------
# Wrapper
# --------------------------------------------------------------------------
def cbow_forward(context_words, target_words, negative_words, in_emb, out_emb,
                 *, vmem_table_budget_bytes=2 << 20):
    """Returns the scalar mean loss (matches CBOWModel.forward)."""
    B, C = context_words.shape
    K = negative_words.shape[1]
    V, D = in_emb.shape
    K1 = K + 1

    # Lane-dense embedding dim (zero columns don't change dots / the mean).
    D_pad = max(_LANES, _round_up(D, _LANES))
    in_emb_p = jnp.pad(in_emb.astype(jnp.float32), ((0, 0), (0, D_pad - D)))
    out_emb_p = jnp.pad(out_emb.astype(jnp.float32), ((0, 0), (0, D_pad - D)))

    # Batch tiling: pad B to a multiple of the tile size; keep >= 2 tiles when
    # possible so the "parallel" grid axis can populate both v7x TensorCores.
    B_T = min(128, _round_up(B, 8))
    B_pad = _round_up(B, B_T)
    if B_pad // B_T < 2 and B_T % 16 == 0:
        B_T //= 2
    num_tiles = B_pad // B_T

    pad_rows = B_pad - B
    ctx_idx = jnp.pad(context_words.astype(jnp.int32), ((0, pad_rows), (0, 0)))
    tgt_idx = jnp.pad(target_words.astype(jnp.int32), ((0, pad_rows),))
    neg_idx = jnp.pad(negative_words.astype(jnp.int32), ((0, pad_rows), (0, 0)))
    # Fused output-table indices: column 0 = target, columns 1..K = negatives.
    out_idx = jnp.concatenate([tgt_idx[:, None], neg_idx], axis=1)   # (B_pad, K+1)

    per_example = None
    # Fast path: both (padded) tables resident in VMEM, in-kernel gather.
    if 2 * V * D_pad * 4 <= vmem_table_budget_bytes:
        try:
            per_example = _cbow_vmem_call(
                ctx_idx.reshape(num_tiles, B_T, C),
                out_idx.reshape(num_tiles, B_T, K1),
                in_emb_p, out_emb_p, num_tiles, B_T)
            per_example.block_until_ready()
        except Exception:   # in-kernel gather unsupported -> HBM-DMA fallback
            per_example = None
    if per_example is None:
        per_example = _cbow_dma_call(
            ctx_idx.reshape(-1), out_idx.reshape(-1),
            in_emb_p, out_emb_p, num_tiles, B_T, C, K1)

    # Final tiny reduction in the wrapper; padded rows are ignored.
    return jnp.mean(per_example[:B, 0])


def _reference(context_words, target_words, negative_words, in_emb, out_emb):
    ctx_e = in_emb[context_words]                      # (B, C, D)
    ctx_m = jnp.mean(ctx_e, axis=1)                    # (B, D)
    tgt_e = out_emb[target_words]                      # (B, D)
    pos_s = jnp.sum(ctx_m * tgt_e, axis=1)             # (B,)
    pos_l = jnp.log(jax.nn.sigmoid(pos_s) + 1e-10)
    neg_e = out_emb[negative_words]                    # (B, K, D)
    neg_s = jnp.einsum('bkd,bd->bk', neg_e, ctx_m)     # (B, K)
    neg_l = jnp.sum(jnp.log(jax.nn.sigmoid(-neg_s) + 1e-10), axis=1)
    return jnp.mean(-(pos_l + neg_l))


if __name__ == "__main__":
    V, D = 64, 32          # vocab_size, embedding_dim
    B, C, K = 16, 4, 5     # batch (2 tiles of 8), context window, negatives

    key = jax.random.PRNGKey(0)
    k_in, k_out, k_ctx, k_tgt, k_neg = jax.random.split(key, 5)

    # xavier_uniform_ init: U(-a, a) with a = sqrt(6 / (fan_in + fan_out))
    a = (6.0 / (V + D)) ** 0.5
    in_emb = jax.random.uniform(k_in, (V, D), jnp.float32, minval=-a, maxval=a)
    out_emb = jax.random.uniform(k_out, (V, D), jnp.float32, minval=-a, maxval=a)

    context_words = jax.random.randint(k_ctx, (B, C), 0, V, dtype=jnp.int32)
    target_words = jax.random.randint(k_tgt, (B,), 0, V, dtype=jnp.int32)
    negative_words = jax.random.randint(k_neg, (B, K), 0, V, dtype=jnp.int32)

    loss = cbow_forward(context_words, target_words, negative_words, in_emb, out_emb)
    jax.block_until_ready(loss)

    ref = _reference(context_words, target_words, negative_words, in_emb, out_emb)
    assert jnp.allclose(loss, ref, rtol=1e-5, atol=1e-5), (loss, ref)

    print("KERNEL_OK")
</pallas_src>

<mosaic_0001>
module attributes {stable_mosaic.version = 11 : i64} {
  func.func @_cbow_dma_kernel(%arg0: i32, %arg1: memref<64xi32, #tpu.memory_space<smem>>, %arg2: memref<96xi32, #tpu.memory_space<smem>>, %arg3: memref<64x128xf32, #tpu.memory_space<any>>, %arg4: memref<64x128xf32, #tpu.memory_space<any>>, %arg5: memref<8x128xf32, #tpu.memory_space<vmem>>, %arg6: memref<8x4x128xf32, #tpu.memory_space<vmem>>, %arg7: memref<8x6x128xf32, #tpu.memory_space<vmem>>, %arg8: memref<1x!tpu.dma_semaphore, #tpu.memory_space<semaphore_mem>>, %arg9: memref<1x!tpu.dma_semaphore, #tpu.memory_space<semaphore_mem>>) attributes {dimension_semantics = [#tpu.dimension_semantics<parallel>], iteration_bounds = array<i64: 2>, scalar_prefetch = 2 : i64, scratch_operands = 4 : i64, tpu.core_type = #tpu.core_type<tc>, window_params = [{}, {}, {transform_indices = @transform_2, window_bounds = array<i64: 8, 128>}]} {
    %c8_i32 = arith.constant 8 : i32
    %0 = arith.muli %arg0, %c8_i32 : i32
    %c0_i32 = arith.constant 0 : i32
    %c8_i32_0 = arith.constant 8 : i32
    %1 = arith.addi %c0_i32, %c8_i32_0 : i32
    %c1_i32 = arith.constant 1 : i32
    scf.for %arg10 = %c0_i32 to %1 step %c1_i32  : i32 {
      %c1_i32_19 = arith.constant 1 : i32
      %36 = arith.muli %arg10, %c1_i32_19 : i32
      %c0_i32_20 = arith.constant 0 : i32
      %37 = arith.addi %c0_i32_20, %36 : i32
      %38 = arith.addi %0, %37 : i32
      %c4_i32 = arith.constant 4 : i32
      %39 = arith.muli %38, %c4_i32 : i32
      %c0_i32_21 = arith.constant 0 : i32
      %40 = arith.addi %39, %c0_i32_21 : i32
      %41 = arith.index_cast %40 : i32 to index
      %42 = memref.load %arg1[%41] : memref<64xi32, #tpu.memory_space<smem>>
      %c0_i32_22 = arith.constant 0 : i32
      %c0_i32_23 = arith.constant 0 : i32
      %43 = tpu.memref_slice %arg3[%42, %c0_i32_23] : memref<64x128xf32, #tpu.memory_space<any>> -> memref<1x128xf32, #tpu.memory_space<any>>
      %c0_i32_24 = arith.constant 0 : i32
      %c0_i32_25 = arith.constant 0 : i32
      %44 = tpu.memref_slice %arg6[%37, %c0_i32_24, %c0_i32_25] : memref<8x4x128xf32, #tpu.memory_space<vmem>> -> memref<1x1x128xf32, #tpu.memory_space<vmem>>
      %45 = tpu.memref_squeeze %44 : memref<1x1x128xf32, #tpu.memory_space<vmem>> -> memref<1x128xf32, #tpu.memory_space<vmem>>
      %46 = tpu.memref_slice %arg8[%c0_i32_22] : memref<1x!tpu.dma_semaphore, #tpu.memory_space<semaphore_mem>> -> memref<1x!tpu.dma_semaphore, #tpu.memory_space<semaphore_mem>>
      %47 = tpu.memref_squeeze %46 : memref<1x!tpu.dma_semaphore, #tpu.memory_space<semaphore_mem>> -> memref<!tpu.dma_semaphore, #tpu.memory_space<semaphore_mem>>
      tpu.enqueue_dma source(%43 : memref<1x128xf32, #tpu.memory_space<any>>) target(%45 : memref<1x128xf32, #tpu.memory_space<vmem>>) target_semaphore(%47 : memref<!tpu.dma_semaphore, #tpu.memory_space<semaphore_mem>>)
      %48 = arith.addi %0, %37 : i32
      %c4_i32_26 = arith.constant 4 : i32
      %49 = arith.muli %48, %c4_i32_26 : i32
      %c1_i32_27 = arith.constant 1 : i32
      %50 = arith.addi %49, %c1_i32_27 : i32
      %51 = arith.index_cast %50 : i32 to index
      %52 = memref.load %arg1[%51] : memref<64xi32, #tpu.memory_space<smem>>
      %c0_i32_28 = arith.constant 0 : i32
      %c0_i32_29 = arith.constant 0 : i32
      %53 = tpu.memref_slice %arg3[%52, %c0_i32_29] : memref<64x128xf32, #tpu.memory_space<any>> -> memref<1x128xf32, #tpu.memory_space<any>>
      %c1_i32_30 = arith.constant 1 : i32
      %c0_i32_31 = arith.constant 0 : i32
      %54 = tpu.memref_slice %arg6[%37, %c1_i32_30, %c0_i32_31] : memref<8x4x128xf32, #tpu.memory_space<vmem>> -> memref<1x1x128xf32, #tpu.memory_space<vmem>>
      %55 = tpu.memref_squeeze %54 : memref<1x1x128xf32, #tpu.memory_space<vmem>> -> memref<1x128xf32, #tpu.memory_space<vmem>>
      %56 = tpu.memref_slice %arg8[%c0_i32_28] : memref<1x!tpu.dma_semaphore, #tpu.memory_space<semaphore_mem>> -> memref<1x!tpu.dma_semaphore, #tpu.memory_space<semaphore_mem>>
      %57 = tpu.memref_squeeze %56 : memref<1x!tpu.dma_semaphore, #tpu.memory_space<semaphore_mem>> -> memref<!tpu.dma_semaphore, #tpu.memory_space<semaphore_mem>>
      tpu.enqueue_dma source(%53 : memref<1x128xf32, #tpu.memory_space<any>>) target(%55 : memref<1x128xf32, #tpu.memory_space<vmem>>) target_semaphore(%57 : memref<!tpu.dma_semaphore, #tpu.memory_space<semaphore_mem>>)
      %58 = arith.addi %0, %37 : i32
      %c4_i32_32 = arith.constant 4 : i32
      %59 = arith.muli %58, %c4_i32_32 : i32
      %c2_i32 = arith.constant 2 : i32
      %60 = arith.addi %59, %c2_i32 : i32
      %61 = arith.index_cast %60 : i32 to index
      %62 = memref.load %arg1[%61] : memref<64xi32, #tpu.memory_space<smem>>
      %c0_i32_33 = arith.constant 0 : i32
      %c0_i32_34 = arith.constant 0 : i32
      %63 = tpu.memref_slice %arg3[%62, %c0_i32_34] : memref<64x128xf32, #tpu.memory_space<any>> -> memref<1x128xf32, #tpu.memory_space<any>>
      %c2_i32_35 = arith.constant 2 : i32
      %c0_i32_36 = arith.constant 0 : i32
      %64 = tpu.memref_slice %arg6[%37, %c2_i32_35, %c0_i32_36] : memref<8x4x128xf32, #tpu.memory_space<vmem>> -> memref<1x1x128xf32, #tpu.memory_space<vmem>>
      %65 = tpu.memref_squeeze %64 : memref<1x1x128xf32, #tpu.memory_space<vmem>> -> memref<1x128xf32, #tpu.memory_space<vmem>>
      %66 = tpu.memref_slice %arg8[%c0_i32_33] : memref<1x!tpu.dma_semaphore, #tpu.memory_space<semaphore_mem>> -> memref<1x!tpu.dma_semaphore, #tpu.memory_space<semaphore_mem>>
      %67 = tpu.memref_squeeze %66 : memref<1x!tpu.dma_semaphore, #tpu.memory_space<semaphore_mem>> -> memref<!tpu.dma_semaphore, #tpu.memory_space<semaphore_mem>>
      tpu.enqueue_dma source(%63 : memref<1x128xf32, #tpu.memory_space<any>>) target(%65 : memref<1x128xf32, #tpu.memory_space<vmem>>) target_semaphore(%67 : memref<!tpu.dma_semaphore, #tpu.memory_space<semaphore_mem>>)
      %68 = arith.addi %0, %37 : i32
      %c4_i32_37 = arith.constant 4 : i32
      %69 = arith.muli %68, %c4_i32_37 : i32
      %c3_i32 = arith.constant 3 : i32
      %70 = arith.addi %69, %c3_i32 : i32
      %71 = arith.index_cast %70 : i32 to index
      %72 = memref.load %arg1[%71] : memref<64xi32, #tpu.memory_space<smem>>
      %c0_i32_38 = arith.constant 0 : i32
      %c0_i32_39 = arith.constant 0 : i32
      %73 = tpu.memref_slice %arg3[%72, %c0_i32_39] : memref<64x128xf32, #tpu.memory_space<any>> -> memref<1x128xf32, #tpu.memory_space<any>>
      %c3_i32_40 = arith.constant 3 : i32
      %c0_i32_41 = arith.constant 0 : i32
      %74 = tpu.memref_slice %arg6[%37, %c3_i32_40, %c0_i32_41] : memref<8x4x128xf32, #tpu.memory_space<vmem>> -> memref<1x1x128xf32, #tpu.memory_space<vmem>>
      %75 = tpu.memref_squeeze %74 : memref<1x1x128xf32, #tpu.memory_space<vmem>> -> memref<1x128xf32, #tpu.memory_space<vmem>>
      %76 = tpu.memref_slice %arg8[%c0_i32_38] : memref<1x!tpu.dma_semaphore, #tpu.memory_space<semaphore_mem>> -> memref<1x!tpu.dma_semaphore, #tpu.memory_space<semaphore_mem>>
      %77 = tpu.memref_squeeze %76 : memref<1x!tpu.dma_semaphore, #tpu.memory_space<semaphore_mem>> -> memref<!tpu.dma_semaphore, #tpu.memory_space<semaphore_mem>>
      tpu.enqueue_dma source(%73 : memref<1x128xf32, #tpu.memory_space<any>>) target(%75 : memref<1x128xf32, #tpu.memory_space<vmem>>) target_semaphore(%77 : memref<!tpu.dma_semaphore, #tpu.memory_space<semaphore_mem>>)
      %78 = arith.addi %0, %37 : i32
      %c6_i32 = arith.constant 6 : i32
      %79 = arith.muli %78, %c6_i32 : i32
      %c0_i32_42 = arith.constant 0 : i32
      %80 = arith.addi %79, %c0_i32_42 : i32
      %81 = arith.index_cast %80 : i32 to index
      %82 = memref.load %arg2[%81] : memref<96xi32, #tpu.memory_space<smem>>
      %c0_i32_43 = arith.constant 0 : i32
      %c0_i32_44 = arith.constant 0 : i32
      %83 = tpu.memref_slice %arg4[%82, %c0_i32_44] : memref<64x128xf32, #tpu.memory_space<any>> -> memref<1x128xf32, #tpu.memory_space<any>>
      %c0_i32_45 = arith.constant 0 : i32
      %c0_i32_46 = arith.constant 0 : i32
      %84 = tpu.memref_slice %arg7[%37, %c0_i32_45, %c0_i32_46] : memref<8x6x128xf32, #tpu.memory_space<vmem>> -> memref<1x1x128xf32, #tpu.memory_space<vmem>>
      %85 = tpu.memref_squeeze %84 : memref<1x1x128xf32, #tpu.memory_space<vmem>> -> memref<1x128xf32, #tpu.memory_space<vmem>>
      %86 = tpu.memref_slice %arg9[%c0_i32_43] : memref<1x!tpu.dma_semaphore, #tpu.memory_space<semaphore_mem>> -> memref<1x!tpu.dma_semaphore, #tpu.memory_space<semaphore_mem>>
      %87 = tpu.memref_squeeze %86 : memref<1x!tpu.dma_semaphore, #tpu.memory_space<semaphore_mem>> -> memref<!tpu.dma_semaphore, #tpu.memory_space<semaphore_mem>>
      tpu.enqueue_dma source(%83 : memref<1x128xf32, #tpu.memory_space<any>>) target(%85 : memref<1x128xf32, #tpu.memory_space<vmem>>) target_semaphore(%87 : memref<!tpu.dma_semaphore, #tpu.memory_space<semaphore_mem>>)
      %88 = arith.addi %0, %37 : i32
      %c6_i32_47 = arith.constant 6 : i32
      %89 = arith.muli %88, %c6_i32_47 : i32
      %c1_i32_48 = arith.constant 1 : i32
      %90 = arith.addi %89, %c1_i32_48 : i32
      %91 = arith.index_cast %90 : i32 to index
      %92 = memref.load %arg2[%91] : memref<96xi32, #tpu.memory_space<smem>>
      %c0_i32_49 = arith.constant 0 : i32
      %c0_i32_50 = arith.constant 0 : i32
      %93 = tpu.memref_slice %arg4[%92, %c0_i32_50] : memref<64x128xf32, #tpu.memory_space<any>> -> memref<1x128xf32, #tpu.memory_space<any>>
      %c1_i32_51 = arith.constant 1 : i32
      %c0_i32_52 = arith.constant 0 : i32
      %94 = tpu.memref_slice %arg7[%37, %c1_i32_51, %c0_i32_52] : memref<8x6x128xf32, #tpu.memory_space<vmem>> -> memref<1x1x128xf32, #tpu.memory_space<vmem>>
      %95 = tpu.memref_squeeze %94 : memref<1x1x128xf32, #tpu.memory_space<vmem>> -> memref<1x128xf32, #tpu.memory_space<vmem>>
      %96 = tpu.memref_slice %arg9[%c0_i32_49] : memref<1x!tpu.dma_semaphore, #tpu.memory_space<semaphore_mem>> -> memref<1x!tpu.dma_semaphore, #tpu.memory_space<semaphore_mem>>
      %97 = tpu.memref_squeeze %96 : memref<1x!tpu.dma_semaphore, #tpu.memory_space<semaphore_mem>> -> memref<!tpu.dma_semaphore, #tpu.memory_space<semaphore_mem>>
      tpu.enqueue_dma source(%93 : memref<1x128xf32, #tpu.memory_space<any>>) target(%95 : memref<1x128xf32, #tpu.memory_space<vmem>>) target_semaphore(%97 : memref<!tpu.dma_semaphore, #tpu.memory_space<semaphore_mem>>)
      %98 = arith.addi %0, %37 : i32
      %c6_i32_53 = arith.constant 6 : i32
      %99 = arith.muli %98, %c6_i32_53 : i32
      %c2_i32_54 = arith.constant 2 : i32
      %100 = arith.addi %99, %c2_i32_54 : i32
      %101 = arith.index_cast %100 : i32 to index
      %102 = memref.load %arg2[%101] : memref<96xi32, #tpu.memory_space<smem>>
      %c0_i32_55 = arith.constant 0 : i32
      %c0_i32_56 = arith.constant 0 : i32
      %103 = tpu.memref_slice %arg4[%102, %c0_i32_56] : memref<64x128xf32, #tpu.memory_space<any>> -> memref<1x128xf32, #tpu.memory_space<any>>
      %c2_i32_57 = arith.constant 2 : i32
      %c0_i32_58 = arith.constant 0 : i32
      %104 = tpu.memref_slice %arg7[%37, %c2_i32_57, %c0_i32_58] : memref<8x6x128xf32, #tpu.memory_space<vmem>> -> memref<1x1x128xf32, #tpu.memory_space<vmem>>
      %105 = tpu.memref_squeeze %104 : memref<1x1x128xf32, #tpu.memory_space<vmem>> -> memref<1x128xf32, #tpu.memory_space<vmem>>
      %106 = tpu.memref_slice %arg9[%c0_i32_55] : memref<1x!tpu.dma_semaphore, #tpu.memory_space<semaphore_mem>> -> memref<1x!tpu.dma_semaphore, #tpu.memory_space<semaphore_mem>>
      %107 = tpu.memref_squeeze %106 : memref<1x!tpu.dma_semaphore, #tpu.memory_space<semaphore_mem>> -> memref<!tpu.dma_semaphore, #tpu.memory_space<semaphore_mem>>
      tpu.enqueue_dma source(%103 : memref<1x128xf32, #tpu.memory_space<any>>) target(%105 : memref<1x128xf32, #tpu.memory_space<vmem>>) target_semaphore(%107 : memref<!tpu.dma_semaphore, #tpu.memory_space<semaphore_mem>>)
      %108 = arith.addi %0, %37 : i32
      %c6_i32_59 = arith.constant 6 : i32
      %109 = arith.muli %108, %c6_i32_59 : i32
      %c3_i32_60 = arith.constant 3 : i32
      %110 = arith.addi %109, %c3_i32_60 : i32
      %111 = arith.index_cast %110 : i32 to index
      %112 = memref.load %arg2[%111] : memref<96xi32, #tpu.memory_space<smem>>
      %c0_i32_61 = arith.constant 0 : i32
      %c0_i32_62 = arith.constant 0 : i32
      %113 = tpu.memref_slice %arg4[%112, %c0_i32_62] : memref<64x128xf32, #tpu.memory_space<any>> -> memref<1x128xf32, #tpu.memory_space<any>>
      %c3_i32_63 = arith.constant 3 : i32
      %c0_i32_64 = arith.constant 0 : i32
      %114 = tpu.memref_slice %arg7[%37, %c3_i32_63, %c0_i32_64] : memref<8x6x128xf32, #tpu.memory_space<vmem>> -> memref<1x1x128xf32, #tpu.memory_space<vmem>>
      %115 = tpu.memref_squeeze %114 : memref<1x1x128xf32, #tpu.memory_space<vmem>> -> memref<1x128xf32, #tpu.memory_space<vmem>>
      %116 = tpu.memref_slice %arg9[%c0_i32_61] : memref<1x!tpu.dma_semaphore, #tpu.memory_space<semaphore_mem>> -> memref<1x!tpu.dma_semaphore, #tpu.memory_space<semaphore_mem>>
      %117 = tpu.memref_squeeze %116 : memref<1x!tpu.dma_semaphore, #tpu.memory_space<semaphore_mem>> -> memref<!tpu.dma_semaphore, #tpu.memory_space<semaphore_mem>>
      tpu.enqueue_dma source(%113 : memref<1x128xf32, #tpu.memory_space<any>>) target(%115 : memref<1x128xf32, #tpu.memory_space<vmem>>) target_semaphore(%117 : memref<!tpu.dma_semaphore, #tpu.memory_space<semaphore_mem>>)
      %118 = arith.addi %0, %37 : i32
      %c6_i32_65 = arith.constant 6 : i32
      %119 = arith.muli %118, %c6_i32_65 : i32
      %c4_i32_66 = arith.constant 4 : i32
      %120 = arith.addi %119, %c4_i32_66 : i32
      %121 = arith.index_cast %120 : i32 to index
      %122 = memref.load %arg2[%121] : memref<96xi32, #tpu.memory_space<smem>>
      %c0_i32_67 = arith.constant 0 : i32
      %c0_i32_68 = arith.constant 0 : i32
      %123 = tpu.memref_slice %arg4[%122, %c0_i32_68] : memref<64x128xf32, #tpu.memory_space<any>> -> memref<1x128xf32, #tpu.memory_space<any>>
      %c4_i32_69 = arith.constant 4 : i32
      %c0_i32_70 = arith.constant 0 : i32
      %124 = tpu.memref_slice %arg7[%37, %c4_i32_69, %c0_i32_70] : memref<8x6x128xf32, #tpu.memory_space<vmem>> -> memref<1x1x128xf32, #tpu.memory_space<vmem>>
      %125 = tpu.memref_squeeze %124 : memref<1x1x128xf32, #tpu.memory_space<vmem>> -> memref<1x128xf32, #tpu.memory_space<vmem>>
      %126 = tpu.memref_slice %arg9[%c0_i32_67] : memref<1x!tpu.dma_semaphore, #tpu.memory_space<semaphore_mem>> -> memref<1x!tpu.dma_semaphore, #tpu.memory_space<semaphore_mem>>
      %127 = tpu.memref_squeeze %126 : memref<1x!tpu.dma_semaphore, #tpu.memory_space<semaphore_mem>> -> memref<!tpu.dma_semaphore, #tpu.memory_space<semaphore_mem>>
      tpu.enqueue_dma source(%123 : memref<1x128xf32, #tpu.memory_space<any>>) target(%125 : memref<1x128xf32, #tpu.memory_space<vmem>>) target_semaphore(%127 : memref<!tpu.dma_semaphore, #tpu.memory_space<semaphore_mem>>)
      %128 = arith.addi %0, %37 : i32
      %c6_i32_71 = arith.constant 6 : i32
      %129 = arith.muli %128, %c6_i32_71 : i32
      %c5_i32 = arith.constant 5 : i32
      %130 = arith.addi %129, %c5_i32 : i32
      %131 = arith.index_cast %130 : i32 to index
      %132 = memref.load %arg2[%131] : memref<96xi32, #tpu.memory_space<smem>>
      %c0_i32_72 = arith.constant 0 : i32
      %c0_i32_73 = arith.constant 0 : i32
      %133 = tpu.memref_slice %arg4[%132, %c0_i32_73] : memref<64x128xf32, #tpu.memory_space<any>> -> memref<1x128xf32, #tpu.memory_space<any>>
      %c5_i32_74 = arith.constant 5 : i32
      %c0_i32_75 = arith.constant 0 : i32
      %134 = tpu.memref_slice %arg7[%37, %c5_i32_74, %c0_i32_75] : memref<8x6x128xf32, #tpu.memory_space<vmem>> -> memref<1x1x128xf32, #tpu.memory_space<vmem>>
      %135 = tpu.memref_squeeze %134 : memref<1x1x128xf32, #tpu.memory_space<vmem>> -> memref<1x128xf32, #tpu.memory_space<vmem>>
      %136 = tpu.memref_slice %arg9[%c0_i32_72] : memref<1x!tpu.dma_semaphore, #tpu.memory_space<semaphore_mem>> -> memref<1x!tpu.dma_semaphore, #tpu.memory_space<semaphore_mem>>
      %137 = tpu.memref_squeeze %136 : memref<1x!tpu.dma_semaphore, #tpu.memory_space<semaphore_mem>> -> memref<!tpu.dma_semaphore, #tpu.memory_space<semaphore_mem>>
      tpu.enqueue_dma source(%133 : memref<1x128xf32, #tpu.memory_space<any>>) target(%135 : memref<1x128xf32, #tpu.memory_space<vmem>>) target_semaphore(%137 : memref<!tpu.dma_semaphore, #tpu.memory_space<semaphore_mem>>)
    }
    %c8_i32_1 = arith.constant 8 : i32
    %c0_i32_2 = arith.constant 0 : i32
    %2 = tpu.memref_slice %arg8[%c0_i32_2] : memref<1x!tpu.dma_semaphore, #tpu.memory_space<semaphore_mem>> -> memref<1x!tpu.dma_semaphore, #tpu.memory_space<semaphore_mem>>
    %3 = tpu.memref_squeeze %2 : memref<1x!tpu.dma_semaphore, #tpu.memory_space<semaphore_mem>> -> memref<!tpu.dma_semaphore, #tpu.memory_space<semaphore_mem>>
    tpu.wait_dma2 semaphore(%3 : memref<!tpu.dma_semaphore, #tpu.memory_space<semaphore_mem>>) src(%arg6 : memref<8x4x128xf32, #tpu.memory_space<vmem>>) dst(%arg6 : memref<8x4x128xf32, #tpu.memory_space<vmem>>)
    %c0_i32_3 = arith.constant 0 : i32
    %4 = tpu.memref_slice %arg9[%c0_i32_3] : memref<1x!tpu.dma_semaphore, #tpu.memory_space<semaphore_mem>> -> memref<1x!tpu.dma_semaphore, #tpu.memory_space<semaphore_mem>>
    %5 = tpu.memref_squeeze %4 : memref<1x!tpu.dma_semaphore, #tpu.memory_space<semaphore_mem>> -> memref<!tpu.dma_semaphore, #tpu.memory_space<semaphore_mem>>
    tpu.wait_dma2 semaphore(%5 : memref<!tpu.dma_semaphore, #tpu.memory_space<semaphore_mem>>) src(%arg7 : memref<8x6x128xf32, #tpu.memory_space<vmem>>) dst(%arg7 : memref<8x6x128xf32, #tpu.memory_space<vmem>>)
    %c0 = arith.constant 0 : index
    %c0_4 = arith.constant 0 : index
    %c0_5 = arith.constant 0 : index
    %6 = vector.load %arg6[%c0, %c0_4, %c0_5] : memref<8x4x128xf32, #tpu.memory_space<vmem>>, vector<8x4x128xf32>
    %cst = arith.constant dense<0.000000e+00> : vector<8x128xf32>
    %7 = vector.multi_reduction <add>, %6, %cst [1] : vector<8x4x128xf32> to vector<8x128xf32>
    %cst_6 = arith.constant 4.000000e+00 : f32
    %8 = vector.broadcast %cst_6 : f32 to vector<8x128xf32>
    %9 = arith.divf %7, %8 : vector<8x128xf32>
    %c0_7 = arith.constant 0 : index
    %c0_8 = arith.constant 0 : index
    %c0_9 = arith.constant 0 : index
    %10 = vector.load %arg7[%c0_7, %c0_8, %c0_9] : memref<8x6x128xf32, #tpu.memory_space<vmem>>, vector<8x6x128xf32>
    %11 = vector.shape_cast %9 : vector<8x128xf32> to vector<8x1x128xf32>
    %12 = vector.broadcast %11 : vector<8x1x128xf32> to vector<8x6x128xf32>
    %13 = arith.mulf %10, %12 : vector<8x6x128xf32>
    %cst_10 = arith.constant dense<0.000000e+00> : vector<8x6xf32>
    %14 = vector.multi_reduction <add>, %13, %cst_10 [2] : vector<8x6x128xf32> to vector<8x6xf32>
    %15 = tpu.iota {dimensions = array<i32: 1>} : vector<8x6xi32>
    %c0_i32_11 = arith.constant 0 : i32
    %16 = vector.broadcast %c0_i32_11 : i32 to vector<8x6xi32>
    %17 = arith.cmpi eq, %15, %16 : vector<8x6xi32>
    %cst_12 = arith.constant 0.000000e+00 : f32
    %18 = vector.broadcast %cst_12 : f32 to vector<8x6xf32>
    %19 = arith.subf %18, %14 : vector<8x6xf32>
    %20 = arith.select %17, %14, %19 : vector<8x6xi1>, vector<8x6xf32>
    %21 = arith.negf %20 : vector<8x6xf32>
    %22 = math.exp %21 : vector<8x6xf32>
    %cst_13 = arith.constant 1.000000e+00 : f32
    %23 = vector.broadcast %cst_13 : f32 to vector<8x6xf32>
    %24 = arith.addf %23, %22 : vector<8x6xf32>
    %25 = arith.divf %23, %24 : vector<8x6xf32>
    %cst_14 = arith.constant 1.000000e-10 : f32
    %26 = vector.broadcast %cst_14 : f32 to vector<8x6xf32>
    %27 = arith.addf %25, %26 : vector<8x6xf32>
    %28 = math.log %27 : vector<8x6xf32>
    %cst_15 = arith.constant dense<0.000000e+00> : vector<8xf32>
    %29 = vector.multi_reduction <add>, %28, %cst_15 [1] : vector<8x6xf32> to vector<8xf32>
    %30 = vector.shape_cast %29 : vector<8xf32> to vector<8x1xf32>
    %cst_16 = arith.constant 0.000000e+00 : f32
    %31 = vector.broadcast %cst_16 : f32 to vector<8x1xf32>
    %32 = arith.subf %31, %30 : vector<8x1xf32>
    %33 = vector.shape_cast %32 : vector<8x1xf32> to vector<8x1xf32>
    %34 = vector.broadcast %33 : vector<8x1xf32> to vector<8x128xf32>
    %c0_17 = arith.constant 0 : index
    %c0_18 = arith.constant 0 : index
    %35 = vector.load %arg5[%c0_17, %c0_18] : memref<8x128xf32, #tpu.memory_space<vmem>>, vector<8x128xf32>
    tpu.vector_store %arg5[%c0_17, %c0_18], %34 {strides = array<i32>} : memref<8x128xf32, #tpu.memory_space<vmem>>, vector<8x128xf32>,
    return
  }
  func.func @transform_2(%arg0: i32, %arg1: memref<64xi32, #tpu.memory_space<smem>>, %arg2: memref<96xi32, #tpu.memory_space<smem>>) -> (i32, i32) {
    %c0_i32 = arith.constant 0 : i32
    %c0_i32_0 = arith.constant 0 : i32
    return %arg0, %c0_i32 : i32, i32
  }
}

</mosaic_0001>

<llo_original>
// kernel: tpu_custom_call.1
$region0: #{tpu_custom_call.1}
  #allocation0 [shape = 'u32[]', space=smem, size = 0x4, offset = 0x4, fixed_abs, tag = 'smem constant byte address 0x4 - core index']
  #allocation1 [shape = 'u32[144,128]{1,0:T(1,128)}', space=vmem, size = 0x12000, scoped, tag = 'internal scratch']
  #allocation2 [shape = 'f32[8,4,128]{2,1,0:T(4,128)}', space=vmem, size = 0x4000, scoped, tag = 'scratch operand']
  #allocation3 [shape = 'f32[8,6,128]{2,1,0:T(8,128)}', space=vmem, size = 0x8000, scoped, tag = 'scratch operand']
  #allocation4 [shape = 's32[1]{0}', space=sflag, size = 0x4, scoped, tag = 'scratch operand']
  #allocation5 [shape = 's32[1]{0}', space=sflag, size = 0x4, scoped, tag = 'scratch operand']
  #allocation6 [shape = 's32[1]{0}', space=sflag, size = 0x4, scoped, tag = 'scoped memory for tpu_custom_call.1']
  #allocation7 [shape = 'u8[512]{0}', space=smem, size = 0x200, scoped, tag = 'prefetched SMEM operand 0']
  #allocation8 [shape = 'u8[512]{0}', space=smem, size = 0x200, scoped, tag = 'prefetched SMEM operand 1']
  #allocation11 [shape = 's32[]', space=sflag, size = 0x4, offset = 0, fixed_abs, tag = 'sflag constant byte address 0x0 - dummy sync flag']
  #allocation12 [shape = 's32[]', space=sflag, size = 0x4, offset = 0, fixed_abs, tag = 'sflag constant byte address 0x0 - dummy sync flag']
  #allocation13 [shape = 'u32[]', space=smem, size = 0x4, offset = 0x44, fixed_abs, tag = 'smem constant byte address 0x44 - assertion arg 0']
  #allocation14 [shape = 'u32[]', space=smem, size = 0x4, offset = 0x48, fixed_abs, tag = 'smem constant byte address 0x48 - assertion arg 1']
  #allocation15 [shape = 's32[]', space=sflag, size = 0x4, offset = 0, fixed_abs, tag = 'sflag constant byte address 0x0 - dummy sync flag']
  #allocation16 [shape = 's32[]', space=sflag, size = 0x4, offset = 0, fixed_abs, tag = 'sflag constant byte address 0x0 - dummy sync flag']
  #allocation17 [shape = 's32[]', space=sflag, size = 0x4, offset = 0, fixed_abs, tag = 'sflag constant byte address 0x0 - dummy sync flag']
  #allocation18 [shape = 's32[]', space=sflag, size = 0x4, offset = 0, fixed_abs, tag = 'sflag constant byte address 0x0 - dummy sync flag']
  #allocation19 [shape = 's32[]', space=sflag, size = 0x4, offset = 0, fixed_abs, tag = 'sflag constant byte address 0x0 - dummy sync flag']
  #allocation20 [shape = 's32[]', space=sflag, size = 0x4, offset = 0, fixed_abs, tag = 'sflag constant byte address 0x0 - dummy sync flag']
  #allocation21 [shape = 's32[]', space=sflag, size = 0x4, offset = 0, fixed_abs, tag = 'sflag constant byte address 0x0 - dummy sync flag']
  #allocation22 [shape = 's32[]', space=sflag, size = 0x4, offset = 0, fixed_abs, tag = 'sflag constant byte address 0x0 - dummy sync flag']
  #allocation23 [shape = 's32[]', space=sflag, size = 0x4, offset = 0, fixed_abs, tag = 'sflag constant byte address 0x0 - dummy sync flag']
  #allocation24 [shape = 's32[]', space=sflag, size = 0x4, offset = 0, fixed_abs, tag = 'sflag constant byte address 0x0 - dummy sync flag']
  #allocation25 [shape = 's32[]', space=sflag, size = 0x4, offset = 0, fixed_abs, tag = 'sflag constant byte address 0x0 - dummy sync flag']
  #allocation26 [shape = 's32[]', space=sflag, size = 0x4, offset = 0, fixed_abs, tag = 'sflag constant byte address 0x0 - dummy sync flag']
  #allocation27 [shape = 's32[]', space=sflag, size = 0x4, offset = 0, fixed_abs, tag = 'sflag constant byte address 0x0 - dummy sync flag']
  #allocation28 [shape = 's32[]', space=sflag, size = 0x4, offset = 0, fixed_abs, tag = 'sflag constant byte address 0x0 - dummy sync flag']
  #allocation29 [shape = 's32[]', space=sflag, size = 0x4, offset = 0, fixed_abs, tag = 'sflag constant byte address 0x0 - dummy sync flag']
  #allocation30 [shape = 's32[]', space=sflag, size = 0x4, offset = 0, fixed_abs, tag = 'sflag constant byte address 0x0 - dummy sync flag']
  #allocation31 [shape = 's32[]', space=sflag, size = 0x4, offset = 0, fixed_abs, tag = 'sflag constant byte address 0x0 - dummy sync flag']
  #allocation32 [shape = 's32[]', space=sflag, size = 0x4, offset = 0, fixed_abs, tag = 'sflag constant byte address 0x0 - dummy sync flag']
  %s0 = inlined_call_operand.hbm [shape: s32[64], index: 0, kind: input, shape index: {}]
  %s1 = inlined_call_operand.vmem [shape: s32[96], index: 1, kind: input, shape index: {}]
  %s2 = inlined_call_operand.hbm [shape: f32[64,128], index: 2, kind: input, shape index: {}]
  %s3 = inlined_call_operand.hbm [shape: f32[64,128], index: 3, kind: input, shape index: {}]
  %s4 = inlined_call_operand.hbm [shape: f32[16,128], index: 4, kind: output, shape index: {}]
  %s5 = sld [smem:[#allocation0]]
  $region72: #{tpu_custom_call.1} parent=0
    _
  %s7 = ssub.s32 1, %s5
  %s8 = scalar_select 0, %s7, %s5
  %10 = dma.hbm_to_smem %s0, 16, [#allocation7], [#allocation6]
  %s11 = sshll.u32 %s1, 4
  %s12 = int_to_ptr.vmem [resolvable:$true] %s11
  %14 = dma.vmem_to_smem %s12, 16, [#allocation8], [#allocation6]
  %15 = dma.done [#allocation6], 32
  %16 = sfence
  $region1: #{tpu_custom_call.1} parent=0
    #allocation9 [shape = 'u8[8192]{0}', space=vmem, size = 0x2000, scoped, tag = 'output window, operand 0']
    #allocation10 [shape = 's32[2]{0}', space=sflag, size = 0x8, scoped, tag = 'scoped memory for tpu_custom_call.1']
    %17 = vsyncpa [#allocation10], 0
    %s18 = scalar_lea.sflag [#allocation10], 1
    %19 = vsyncpa %s18, 0
    loop: start=0, step=1, limit=3
    $region2: #{tpu_custom_call.1} parent=1 // loop_pre_header
      _
    $region3: #{tpu_custom_call.1} parent=1 // loop_header
      %s21 = sphi 0, %s25
      %p22 = scmp.ge.s32.totalorder %s21, 3
      %s30 = sphi 0, %s32
      %s33 = sphi 0, %s30
      %s43 = sphi 0, %s33
    $region4: #{tpu_custom_call.1} parent=1 // loop_header_branch
      %24 = sbr.rel (%p22) target = $region8
    $region5: #{tpu_custom_call.1} parent=1 // loop_body
      %s26 = ssub.s32 %s21, 1
      %s27 = sadd.s32 %s21, 1
      %s28 = ssub.s32 %s21, %s27
      %p29 = scmp.eq.s32.totalorder %s28, 0
      %s31 = sadd.s32 %s30, 1
      %s32 = scalar_select %p29, %s30, %s31
      %p34 = pneg %p29
      %p35 = scmp.eq.s32.totalorder %s21, 1
      %p36 = por %p34, %p35
      %p37 = scmp.ne.s32.totalorder %s30, %s33
      %p38 = scmp.eq.s32.totalorder %s21, 0
      %p39 = por %p37, %p38
      %p40 = scmp.ne.s32.totalorder %s30, %s33
      %p41 = scmp.eq.s32.totalorder %s26, 1
      %p42 = por %p40, %p41
      %p44 = scmp.ne.s32.totalorder %s33, %s43
      %p45 = scmp.eq.s32.totalorder %s26, 0
      %p46 = por %p44, %p45
      %p47 = scmp.lt.s32.totalorder %s21, 2
      // Predicated region
      $region9: #{tpu_custom_call.1} parent=5 // pred_check
        %p48 = pneg %p47
      $region10: #{tpu_custom_call.1} parent=5 // pred_check_branch
        %50 = sbr.rel (%p48) target = $region12
      $region11: #{tpu_custom_call.1} parent=5 // pred_region
        %p51 = pneg %p39
        %p52 = pneg %p36
        %s53 = sand.u32 %s30, 1
        %s54 = scalar_lea.sflag [#allocation10], %s53
        %s55 = sand.u32 %s30, 1
        %s56 = smul.addr %s55, 8
        %s57 = scalar_lea.vmem [#allocation9], %s56
        %s58 = smul.u32 %s21, 8
        loop: start=0, step=1, limit=8
        $region13: #{tpu_custom_call.1} parent=11 // loop_pre_header
          _
        $region14: #{tpu_custom_call.1} parent=11 // loop_header
          %s60 = sphi 0, %s64
          %p61 = scmp.ge.s32.totalorder %s60, 8
        $region15: #{tpu_custom_call.1} parent=11 // loop_header_branch
          %63 = sbr.rel (%p61) target = $region19
        $region16: #{tpu_custom_call.1} parent=11 // loop_body
          %s65 = sadd.s32 %s58, %s60
          %s66 = smul.u32 %s65, 4
          %s67 = sld [smem:[#allocation7 + %s66]]
          %s68 = smul.addr %s67, 16
          %s69 = scalar_lea.hbm %s2, %s68
          %s70 = smul.u32 %s60, 4
          %s71 = scalar_lea.vmem [#allocation2], %s70
          // Predicated region
          $region20: #{tpu_custom_call.1} parent=16 // pred_check
            _
          $region21: #{tpu_custom_call.1} parent=16 // pred_check_branch
            %73 = sbr.rel target = $region23
          $region22: #{tpu_custom_call.1} parent=16 // pred_region
            %74 = sst [smem:[#allocation13]] [#allocation12]
            %75 = sst [smem:[#allocation14]] [#allocation11]
          $region23: #{tpu_custom_call.1} parent=16 // pred_fallthru
            _
          %77 = shalt.err (0)
          %s79 = sshll.u32 %s71, 4
          %s80 = int_to_ptr.vmem [resolvable:$true] %s79
          %82 = dma.hbm_to_vmem [thread:$0]  %s69, 16, %s80, [#allocation4]
          %s83 = sadd.s32 %s66, 1
          %s84 = sld [smem:[#allocation7 + %s83]]
          %s85 = smul.addr %s84, 16
          %s86 = scalar_lea.hbm %s2, %s85
          %s87 = sadd.s32 1, %s70
          %s88 = scalar_lea.vmem [#allocation2], %s87
          // Predicated region
          $region24: #{tpu_custom_call.1} parent=16 // pred_check
            _
          $region25: #{tpu_custom_call.1} parent=16 // pred_check_branch
            %90 = sbr.rel target = $region27
          $region26: #{tpu_custom_call.1} parent=16 // pred_region
            %91 = sst [smem:[#allocation13]] [#allocation16]
            %92 = sst [smem:[#allocation14]] [#allocation15]
          $region27: #{tpu_custom_call.1} parent=16 // pred_fallthru
            _
          %94 = shalt.err (0)
          %s96 = sshll.u32 %s88, 4
          %s97 = int_to_ptr.vmem [resolvable:$true] %s96
          %99 = dma.hbm_to_vmem [thread:$0]  %s86, 16, %s97, [#allocation4]
          %s100 = sadd.s32 %s66, 2
          %s101 = sld [smem:[#allocation7 + %s100]]
          %s102 = smul.addr %s101, 16
          %s103 = scalar_lea.hbm %s2, %s102
          %s104 = sadd.s32 2, %s70
          %s105 = scalar_lea.vmem [#allocation2], %s104
          // Predicated region
          $region28: #{tpu_custom_call.1} parent=16 // pred_check
            _
          $region29: #{tpu_custom_call.1} parent=16 // pred_check_branch
            %107 = sbr.rel target = $region31
          $region30: #{tpu_custom_call.1} parent=16 // pred_region
            %108 = sst [smem:[#allocation13]] [#allocation18]
            %109 = sst [smem:[#allocation14]] [#allocation17]
          $region31: #{tpu_custom_call.1} parent=16 // pred_fallthru
            _
          %111 = shalt.err (0)
          %s113 = sshll.u32 %s105, 4
          %s114 = int_to_ptr.vmem [resolvable:$true] %s113
          %116 = dma.hbm_to_vmem [thread:$0]  %s103, 16, %s114, [#allocation4]
          %s117 = sadd.s32 %s66, 3
          %s118 = sld [smem:[#allocation7 + %s117]]
          %s119 = smul.addr %s118, 16
          %s120 = scalar_lea.hbm %s2, %s119
          %s121 = sadd.s32 3, %s70
          %s122 = scalar_lea.vmem [#allocation2], %s121
          // Predicated region
          $region32: #{tpu_custom_call.1} parent=16 // pred_check
            _
          $region33: #{tpu_custom_call.1} parent=16 // pred_check_branch
            %124 = sbr.rel target = $region35
          $region34: #{tpu_custom_call.1} parent=16 // pred_region
            %125 = sst [smem:[#allocation13]] [#allocation20]
            %126 = sst [smem:[#allocation14]] [#allocation19]
          $region35: #{tpu_custom_call.1} parent=16 // pred_fallthru
            _
          %128 = shalt.err (0)
          %s130 = sshll.u32 %s122, 4
          %s131 = int_to_ptr.vmem [resolvable:$true] %s130
          %133 = dma.hbm_to_vmem [thread:$0]  %s120, 16, %s131, [#allocation4]
          %s134 = smul.u32 %s65, 6
          %s135 = sld [smem:[#allocation8 + %s134]]
          %s136 = smul.addr %s135, 16
          %s137 = scalar_lea.hbm %s3, %s136
          %s138 = smul.u32 %s60, 8
          %s139 = scalar_lea.vmem [#allocation3], %s138
          // Predicated region
          $region36: #{tpu_custom_call.1} parent=16 // pred_check
            _
          $region37: #{tpu_custom_call.1} parent=16 // pred_check_branch
            %141 = sbr.rel target = $region39
          $region38: #{tpu_custom_call.1} parent=16 // pred_region
            %142 = sst [smem:[#allocation13]] [#allocation22]
            %143 = sst [smem:[#allocation14]] [#allocation21]
          $region39: #{tpu_custom_call.1} parent=16 // pred_fallthru
            _
          %145 = shalt.err (0)
          %s147 = sshll.u32 %s139, 4
          %s148 = int_to_ptr.vmem [resolvable:$true] %s147
          %150 = dma.hbm_to_vmem [thread:$0]  %s137, 16, %s148, [#allocation5]
          %s151 = sadd.s32 %s134, 1
          %s152 = sld [smem:[#allocation8 + %s151]]
          %s153 = smul.addr %s152, 16
          %s154 = scalar_lea.hbm %s3, %s153
          %s155 = sadd.s32 1, %s138
          %s156 = scalar_lea.vmem [#allocation3], %s155
          // Predicated region
          $region40: #{tpu_custom_call.1} parent=16 // pred_check
            _
          $region41: #{tpu_custom_call.1} parent=16 // pred_check_branch
            %158 = sbr.rel target = $region43
          $region42: #{tpu_custom_call.1} parent=16 // pred_region
            %159 = sst [smem:[#allocation13]] [#allocation24]
            %160 = sst [smem:[#allocation14]] [#allocation23]
          $region43: #{tpu_custom_call.1} parent=16 // pred_fallthru
            _
          %162 = shalt.err (0)
          %s164 = sshll.u32 %s156, 4
          %s165 = int_to_ptr.vmem [resolvable:$true] %s164
          %167 = dma.hbm_to_vmem [thread:$0]  %s154, 16, %s165, [#allocation5]
          %s168 = sadd.s32 %s134, 2
          %s169 = sld [smem:[#allocation8 + %s168]]
          %s170 = smul.addr %s169, 16
          %s171 = scalar_lea.hbm %s3, %s170
          %s172 = sadd.s32 2, %s138
          %s173 = scalar_lea.vmem [#allocation3], %s172
          // Predicated region
          $region44: #{tpu_custom_call.1} parent=16 // pred_check
            _
          $region45: #{tpu_custom_call.1} parent=16 // pred_check_branch
            %175 = sbr.rel target = $region47
          $region46: #{tpu_custom_call.1} parent=16 // pred_region
            %176 = sst [smem:[#allocation13]] [#allocation26]
            %177 = sst [smem:[#allocation14]] [#allocation25]
          $region47: #{tpu_custom_call.1} parent=16 // pred_fallthru
            _
          %179 = shalt.err (0)
          %s181 = sshll.u32 %s173, 4
          %s182 = int_to_ptr.vmem [resolvable:$true] %s181
          %184 = dma.hbm_to_vmem [thread:$0]  %s171, 16, %s182, [#allocation5]
          %s185 = sadd.s32 %s134, 3
          %s186 = sld [smem:[#allocation8 + %s185]]
          %s187 = smul.addr %s186, 16
          %s188 = scalar_lea.hbm %s3, %s187
          %s189 = sadd.s32 3, %s138
          %s190 = scalar_lea.vmem [#allocation3], %s189
          // Predicated region
          $region48: #{tpu_custom_call.1} parent=16 // pred_check
            _
          $region49: #{tpu_custom_call.1} parent=16 // pred_check_branch
            %192 = sbr.rel target = $region51
          $region50: #{tpu_custom_call.1} parent=16 // pred_region
            %193 = sst [smem:[#allocation13]] [#allocation28]
            %194 = sst [smem:[#allocation14]] [#allocation27]
          $region51: #{tpu_custom_call.1} parent=16 // pred_fallthru
            _
          %196 = shalt.err (0)
          %s198 = sshll.u32 %s190, 4
          %s199 = int_to_ptr.vmem [resolvable:$true] %s198
          %201 = dma.hbm_to_vmem [thread:$0]  %s188, 16, %s199, [#allocation5]
          %s202 = sadd.s32 %s134, 4
          %s203 = sld [smem:[#allocation8 + %s202]]
          %s204 = smul.addr %s203, 16
          %s205 = scalar_lea.hbm %s3, %s204
          %s206 = sadd.s32 4, %s138
          %s207 = scalar_lea.vmem [#allocation3], %s206
          // Predicated region
          $region52: #{tpu_custom_call.1} parent=16 // pred_check
            _
          $region53: #{tpu_custom_call.1} parent=16 // pred_check_branch
            %209 = sbr.rel target = $region55
          $region54: #{tpu_custom_call.1} parent=16 // pred_region
            %210 = sst [smem:[#allocation13]] [#allocation30]
            %211 = sst [smem:[#allocation14]] [#allocation29]
          $region55: #{tpu_custom_call.1} parent=16 // pred_fallthru
            _
          %213 = shalt.err (0)
          %s215 = sshll.u32 %s207, 4
          %s216 = int_to_ptr.vmem [resolvable:$true] %s215
          %218 = dma.hbm_to_vmem [thread:$0]  %s205, 16, %s216, [#allocation5]
          %s219 = sadd.s32 %s134, 5
          %s220 = sld [smem:[#allocation8 + %s219]]
          %s221 = smul.addr %s220, 16
          %s222 = scalar_lea.hbm %s3, %s221
          %s223 = sadd.s32 5, %s138
          %s224 = scalar_lea.vmem [#allocation3], %s223
          // Predicated region
          $region56: #{tpu_custom_call.1} parent=16 // pred_check
            _
          $region57: #{tpu_custom_call.1} parent=16 // pred_check_branch
            %226 = sbr.rel target = $region59
          $region58: #{tpu_custom_call.1} parent=16 // pred_region
            %227 = sst [smem:[#allocation13]] [#allocation32]
            %228 = sst [smem:[#allocation14]] [#allocation31]
          $region59: #{tpu_custom_call.1} parent=16 // pred_fallthru
            _
          %230 = shalt.err (0)
          %s232 = sshll.u32 %s224, 4
          %s233 = int_to_ptr.vmem [resolvable:$true] %s232
          %235 = dma.hbm_to_vmem [thread:$0]  %s222, 16, %s233, [#allocation5]
        $region17: #{tpu_custom_call.1} parent=11 // loop_footer
          %s64 = sadd.s32 1, %s60
        $region18: #{tpu_custom_call.1} parent=11 // loop_footer_branch
          %59 = sbr.rel target = $region14
        $region19: #{tpu_custom_call.1} parent=11 // loop_exit
          _
        %s236 = smul.u32 8, 4
        %s237 = smul.u32 %s236, 1
        %s238 = sshll.u32 %s237, 4
        %239 = dma.done [#allocation4], %s238
        %s240 = smul.u32 8, 6
        %s241 = smul.u32 %s240, 1
        %s242 = sshll.u32 %s241, 4
        %243 = dma.done [#allocation5], %s242
        %v244 = vld [vmem:[#allocation2] sm:$0xf]
        %v245 = vld [vmem:[#allocation2 + $0x4] sm:$0xf]
        %v246 = vld [vmem:[#allocation2 + $0x8] sm:$0xf]
        %v247 = vld [vmem:[#allocation2 + $0xc] sm:$0xf]
        %v248 = vld [vmem:[#allocation2 + $0x10] sm:$0xf]
        %v249 = vld [vmem:[#allocation2 + $0x14] sm:$0xf]
        %v250 = vld [vmem:[#allocation2 + $0x18] sm:$0xf]
        %v251 = vld [vmem:[#allocation2 + $0x1c] sm:$0xf]
        %vm252 = vcmask 1043456
        %v253 = vsel %vm252, %v244, 0.0
        %v254 = vrot.slane %v253, 4
        %v255 = vadd.f32 %v253, %v254
        %v256 = vrot.slane %v255, 2
        %v257 = vadd.f32 %v255, %v256
        %v258 = vrot.slane %v257, 1
        %v259 = vadd.f32 %v257, %v258
        %v260 = vsel %vm252, %v245, 0.0
        %v261 = vrot.slane %v260, 4
        %v262 = vadd.f32 %v260, %v261
        %v263 = vrot.slane %v262, 2
        %v264 = vadd.f32 %v262, %v263
        %v265 = vrot.slane %v264, 1
        %v266 = vadd.f32 %v264, %v265
        %v267 = vsel %vm252, %v246, 0.0
        %v268 = vrot.slane %v267, 4
        %v269 = vadd.f32 %v267, %v268
        %v270 = vrot.slane %v269, 2
        %v271 = vadd.f32 %v269, %v270
        %v272 = vrot.slane %v271, 1
        %v273 = vadd.f32 %v271, %v272
        %v274 = vsel %vm252, %v247, 0.0
        %v275 = vrot.slane %v274, 4
        %v276 = vadd.f32 %v274, %v275
        %v277 = vrot.slane %v276, 2
        %v278 = vadd.f32 %v276, %v277
        %v279 = vrot.slane %v278, 1
        %v280 = vadd.f32 %v278, %v279
        %v281 = vsel %vm252, %v248, 0.0
        %v282 = vrot.slane %v281, 4
        %v283 = vadd.f32 %v281, %v282
        %v284 = vrot.slane %v283, 2
        %v285 = vadd.f32 %v283, %v284
        %v286 = vrot.slane %v285, 1
        %v287 = vadd.f32 %v285, %v286
        %v288 = vsel %vm252, %v249, 0.0
        %v289 = vrot.slane %v288, 4
        %v290 = vadd.f32 %v288, %v289
        %v291 = vrot.slane %v290, 2
        %v292 = vadd.f32 %v290, %v291
        %v293 = vrot.slane %v292, 1
        %v294 = vadd.f32 %v292, %v293
        %v295 = vsel %vm252, %v250, 0.0
        %v296 = vrot.slane %v295, 4
        %v297 = vadd.f32 %v295, %v296
        %v298 = vrot.slane %v297, 2
        %v299 = vadd.f32 %v297, %v298
        %v300 = vrot.slane %v299, 1
        %v301 = vadd.f32 %v299, %v300
        %v302 = vsel %vm252, %v251, 0.0
        %v303 = vrot.slane %v302, 4
        %v304 = vadd.f32 %v302, %v303
        %v305 = vrot.slane %v304, 2
        %v306 = vadd.f32 %v304, %v305
        %v307 = vrot.slane %v306, 1
        %v308 = vadd.f32 %v306, %v307
        %v309 = vrcp.pop 4.0
        %v310 = vmul.f32 %v259, %v309
        %v311 = vmul.f32 %v266, %v309
        %v312 = vmul.f32 %v273, %v309
        %v313 = vmul.f32 %v280, %v309
        %v314 = vmul.f32 %v287, %v309
        %v315 = vmul.f32 %v294, %v309
        %v316 = vmul.f32 %v301, %v309
        %v317 = vmul.f32 %v308, %v309
        %v318 = vld [vmem:[#allocation3] sm:$0x3f]
        %v319 = vld [vmem:[#allocation3 + $0x8] sm:$0x3f]
        %v320 = vld [vmem:[#allocation3 + $0x10] sm:$0x3f]
        %v321 = vld [vmem:[#allocation3 + $0x18] sm:$0x3f]
        %v322 = vld [vmem:[#allocation3 + $0x20] sm:$0x3f]
        %v323 = vld [vmem:[#allocation3 + $0x28] sm:$0x3f]
        %v324 = vld [vmem:[#allocation3 + $0x30] sm:$0x3f]
        %v325 = vld [vmem:[#allocation3 + $0x38] sm:$0x3f]
        %v326 = vmul.f32 %v318, %v310
        %v327 = vmul.f32 %v319, %v311
        %v328 = vmul.f32 %v320, %v312
        %v329 = vmul.f32 %v321, %v313
        %v330 = vmul.f32 %v322, %v314
        %v331 = vmul.f32 %v323, %v315
        %v332 = vmul.f32 %v324, %v316
        %v333 = vmul.f32 %v325, %v317
        %vm334 = vcmask 1045504
        %v335 = vsel %vm334, %v326, 0.0
        %336 = vadd.xlane.f32.xlu0 %v335
        %v337 = vpop.xlane.xlu0 %336
        %v338 = vsel %vm334, %v327, 0.0
        %339 = vadd.xlane.f32.xlu0 %v338
        %v340 = vpop.xlane.xlu0 %339
        %v341 = vsel %vm334, %v328, 0.0
        %342 = vadd.xlane.f32.xlu0 %v341
        %v343 = vpop.xlane.xlu0 %342
        %v344 = vsel %vm334, %v329, 0.0
        %345 = vadd.xlane.f32.xlu0 %v344
        %v346 = vpop.xlane.xlu0 %345
        %v347 = vsel %vm334, %v330, 0.0
        %348 = vadd.xlane.f32.xlu0 %v347
        %v349 = vpop.xlane.xlu0 %348
        %v350 = vsel %vm334, %v331, 0.0
        %351 = vadd.xlane.f32.xlu0 %v350
        %v352 = vpop.xlane.xlu0 %351
        %v353 = vsel %vm334, %v332, 0.0
        %354 = vadd.xlane.f32.xlu0 %v353
        %v355 = vpop.xlane.xlu0 %354
        %v356 = vsel %vm334, %v333, 0.0
        %357 = vadd.xlane.f32.xlu0 %v356
        %v358 = vpop.xlane.xlu0 %357
        %v359 = vlaneseq
        %v360 = vand.u32 %v359, 127
        %vm361 = vcmp.eq.s32.totalorder %v360, 0
        %v362 = vsub.f32 0.0, %v337
        %v363 = vsub.f32 0.0, %v340
        %v364 = vsub.f32 0.0, %v343
        %v365 = vsub.f32 0.0, %v346
        %v366 = vsub.f32 0.0, %v349
        %v367 = vsub.f32 0.0, %v352
        %v368 = vsub.f32 0.0, %v355
        %v369 = vsub.f32 0.0, %v358
        %v378 = vlaneseq
        %v379 = vshrl.u32 %v378, 7
        %v380 = vsub.s32 %v360, %v379
        %v381 = vrot.slane %v337, %v380
        %v382 = vlaneseq
        %v383 = vshrl.u32 %v382, 7
        %v384 = vsub.s32 %v360, %v383
        %v385 = vrot.slane %v340, %v384
        %v386 = vlaneseq
        %v387 = vshrl.u32 %v386, 7
        %v388 = vsub.s32 %v360, %v387
        %v389 = vrot.slane %v343, %v388
        %v390 = vlaneseq
        %v391 = vshrl.u32 %v390, 7
        %v392 = vsub.s32 %v360, %v391
        %v393 = vrot.slane %v346, %v392
        %v394 = vlaneseq
        %v395 = vshrl.u32 %v394, 7
        %v396 = vsub.s32 %v360, %v395
        %v397 = vrot.slane %v349, %v396
        %v398 = vlaneseq
        %v399 = vshrl.u32 %v398, 7
        %v400 = vsub.s32 %v360, %v399
        %v401 = vrot.slane %v352, %v400
        %v402 = vlaneseq
        %v403 = vshrl.u32 %v402, 7
        %v404 = vsub.s32 %v360, %v403
        %v405 = vrot.slane %v355, %v404
        %v406 = vlaneseq
        %v407 = vshrl.u32 %v406, 7
        %v408 = vsub.s32 %v360, %v407
        %v409 = vrot.slane %v358, %v408
        %vm410 = vcmask 1041409
        %v411 = vsel %vm410, %v385, %v381
        %vm412 = vcmask 1042434
        %v413 = vsel %vm412, %v389, %v411
        %vm414 = vcmask 1043459
        %v415 = vsel %vm414, %v393, %v413
        %vm416 = vcmask 1044484
        %v417 = vsel %vm416, %v397, %v415
        %vm418 = vcmask 1045509
        %v419 = vsel %vm418, %v401, %v417
        %vm420 = vcmask 1046534
        %v421 = vsel %vm420, %v405, %v419
        %vm422 = vcmask 1047559
        %v423 = vsel %vm422, %v409, %v421
        %v433 = vlaneseq
        %v434 = vshrl.u32 %v433, 7
        %v435 = vsub.s32 %v360, %v434
        %v436 = vrot.slane %v362, %v435
        %v437 = vlaneseq
        %v438 = vshrl.u32 %v437, 7
        %v439 = vsub.s32 %v360, %v438
        %v440 = vrot.slane %v363, %v439
        %v441 = vlaneseq
        %v442 = vshrl.u32 %v441, 7
        %v443 = vsub.s32 %v360, %v442
        %v444 = vrot.slane %v364, %v443
        %v445 = vlaneseq
        %v446 = vshrl.u32 %v445, 7
        %v447 = vsub.s32 %v360, %v446
        %v448 = vrot.slane %v365, %v447
        %v449 = vlaneseq
        %v450 = vshrl.u32 %v449, 7
        %v451 = vsub.s32 %v360, %v450
        %v452 = vrot.slane %v366, %v451
        %v453 = vlaneseq
        %v454 = vshrl.u32 %v453, 7
        %v455 = vsub.s32 %v360, %v454
        %v456 = vrot.slane %v367, %v455
        %v457 = vlaneseq
        %v458 = vshrl.u32 %v457, 7
        %v459 = vsub.s32 %v360, %v458
        %v460 = vrot.slane %v368, %v459
        %v461 = vlaneseq
        %v462 = vshrl.u32 %v461, 7
        %v463 = vsub.s32 %v360, %v462
        %v464 = vrot.slane %v369, %v463
        %v465 = vsel %vm410, %v440, %v436
        %v466 = vsel %vm412, %v444, %v465
        %v467 = vsel %vm414, %v448, %v466
        %v468 = vsel %vm416, %v452, %v467
        %v469 = vsel %vm418, %v456, %v468
        %v470 = vsel %vm420, %v460, %v469
        %v471 = vsel %vm422, %v464, %v470
        %v473 = vsel %vm361, %v423, %v471
        %v474 = vxor.u32 %v473, 2147483648
        %v475 = vmul.f32 %v474, 1.442695
        %v476 = vpow.pop %v475
        %v477 = vadd.f32 %v476, 1.0
        %v478 = vrcp.pop %v477
        %v479 = vmul.f32 1.0, %v478
        %v480 = vadd.f32 %v479, 1e-10
        %v481 = vlog2.pop %v480
        %v482 = vmul.f32 %v481, 0.6931472
        %vm483 = vcmask 48128
        %v484 = vsel %vm483, %v482, 0.0
        %485 = vadd.xlane.f32.xlu0 %v484
        %v486 = vpop.xlane.xlu0 %485
        %v487 = vsub.f32 0.0, %v486
        %488 = vst [vmem:[%s57] sm:$0xff] %v487
        %s489 = sand.u32 %s30, 1
        %s490 = scalar_lea.sflag [#allocation10], %s489
        %s491 = sand.u32 %s30, 1
        %s492 = smul.addr %s491, 8
        %s493 = scalar_lea.vmem [#allocation9], %s492
        // Predicated region
        $region60: #{tpu_custom_call.1} parent=11 // pred_check
          %p494 = pneg %p36
        $region61: #{tpu_custom_call.1} parent=11 // pred_check_branch
          %496 = sbr.rel (%p494) target = $region63
        $region62: #{tpu_custom_call.1} parent=11 // pred_region
          %s498 = ssub.s32 128, 128
          %499 = vsyncadd %s490, %s498
          %s500 = smul.addr %s21, 128
          %s501 = scalar_lea.hbm %s4, %s500
          %s503 = sshll.u32 %s493, 4
          %s504 = int_to_ptr.vmem [resolvable:$true] %s503
          %506 = dma.vmem_to_hbm [thread:$0]  %s504, 128, %s501, %s490
        $region63: #{tpu_custom_call.1} parent=11 // pred_fallthru
          _
      $region12: #{tpu_custom_call.1} parent=5 // pred_fallthru
        _
      %p507 = scmp.le.s32.totalorder 1, %s21
      // Predicated region
      $region64: #{tpu_custom_call.1} parent=5 // pred_check
        %p508 = pneg %p507
      $region65: #{tpu_custom_call.1} parent=5 // pred_check_branch
        %510 = sbr.rel (%p508) target = $region67
      $region66: #{tpu_custom_call.1} parent=5 // pred_region
        %s511 = ssub.s32 %s21, 1
        // Predicated region
        $region68: #{tpu_custom_call.1} parent=66 // pred_check
          %p512 = pneg %p42
        $region69: #{tpu_custom_call.1} parent=66 // pred_check_branch
          %514 = sbr.rel (%p512) target = $region71
        $region70: #{tpu_custom_call.1} parent=66 // pred_region
          %s515 = sand.u32 %s33, 1
          %s516 = scalar_lea.sflag [#allocation10], %s515
          %s517 = sand.u32 %s33, 1
          %s518 = smul.addr %s517, 8
          %s519 = scalar_lea.vmem [#allocation9], %s518
          %520 = dma.done %s516, 128
        $region71: #{tpu_custom_call.1} parent=66 // pred_fallthru
          _
      $region67: #{tpu_custom_call.1} parent=5 // pred_fallthru
        _
    $region6: #{tpu_custom_call.1} parent=1 // loop_footer
      %s25 = sadd.s32 1, %s21
    $region7: #{tpu_custom_call.1} parent=1 // loop_footer_branch
      %20 = sbr.rel target = $region3
    $region8: #{tpu_custom_call.1} parent=1 // loop_exit
      _
    %521 = vsyncpa [#allocation10], 1
    %s522 = scalar_lea.sflag [#allocation10], 1
    %523 = vsyncpa %s522, 1
  %524 = vsyncmov [#allocation4]
  %s525 = vpop.sfrf %524
  %p526 = scmp.eq.s32.totalorder %s525, 0
  %p527 = pneg %p526
  %529 = shalt.err (%p527)
  %530 = vsyncmov [#allocation5]
  %s531 = vpop.sfrf %530
  %p532 = scmp.eq.s32.totalorder %s531, 0
  %p533 = pneg %p532
  %535 = shalt.err (%p533)

</llo_original>
